<compile_context>
chip_gen: v7x
topology: tpu7x:2x2x1
jax: 0.10.0
libtpu: 0.0.40
codegen_flags: <defaults>
</compile_context>

<pallas_src>
import functools

import jax
import jax.numpy as jnp
from jax.experimental import pallas as pl
from jax.experimental.pallas import tpu as pltpu

_LANES = 128


def _round_up(a, b):
    return ((a + b - 1) // b) * b


def _choose_tile_rows(r, cap):
    """Row tile: multiple of 8 (or the full dim if tiny), <= cap, and giving
    at least 2 grid steps when possible so both v7x TensorCores are used."""
    if r <= 8:
        return r
    half = _round_up(-(-r // 2), 8)      # ceil(r/2) rounded up to 8
    return max(8, min(cap, half))


def _packed_kernel(x_ref, o_ref, *, seg):
    """softmax -> sigmoid -> softmax -> sigmoid over independent `seg`-wide
    segments packed along the 128-lane minor axis of the block."""
    w = seg
    t, lanes = x_ref.shape
    log2w = w.bit_length() - 1

    # Per-lane segment id (f32 so the rotate goes down the plain vector path).
    lane = jax.lax.broadcasted_iota(jnp.int32, (t, lanes), 1)
    seg_id = (lane >> log2w).astype(jnp.float32)

    # Butterfly shifts 1, 2, 4, ..., w//2.  For each shift s, mask[i] is True
    # where roll(x, s) delivers an element from lane i's own segment; the
    # remaining lanes take the wrap-corrected roll(x, s - w).  Deriving the
    # masks from an actual roll of the segment-id pattern makes this immune
    # to the roll-direction convention.  Built once, reused by all 3 reduces.
    shifts, masks = [], []
    s = 1
    while s < w:
        masks.append(pltpu.roll(seg_id, s, axis=1) == seg_id)
        shifts.append(s)
        s *= 2

    def seg_allreduce(v, op):
        # Recursive-doubling all-reduce within each w-wide lane segment; every
        # lane ends up holding the full segment reduction (no broadcast step).
        for sh, m in zip(shifts, masks):
            a = pltpu.roll(v, sh, axis=1)
            b = pltpu.roll(v, (sh - w) % lanes, axis=1)
            v = op(v, jnp.where(m, a, b))
        return v

    x = x_ref[...].astype(jnp.float32)

    # softmax #1 (numerically stable: exact per-segment max).
    m1 = seg_allreduce(x, jnp.maximum)
    e1 = jnp.exp(x - m1)
    s1 = e1 * pl.reciprocal(seg_allreduce(e1, jnp.add), approx=True)

    # sigmoid via tanh (one EUP op, no divide).
    g1 = 0.5 * jnp.tanh(0.5 * s1) + 0.5

    # softmax #2: g1 is bounded in (0.5, 0.7311) => exp cannot overflow, so
    # the max-subtraction (and its cross-lane reduce) is dropped.
    e2 = jnp.exp(g1)
    s2 = e2 * pl.reciprocal(seg_allreduce(e2, jnp.add), approx=True)

    # sigmoid
    o_ref[...] = (0.5 * jnp.tanh(0.5 * s2) + 0.5).astype(o_ref.dtype)


def _rowwise_kernel(x_ref, o_ref):
    """General fallback (W not a power-of-two divisor of 128): softmax over
    the whole last axis of the tile with native jnp reductions."""
    x = x_ref[...].astype(jnp.float32)
    m1 = jnp.max(x, axis=-1, keepdims=True)
    e1 = jnp.exp(x - m1)
    s1 = e1 * pl.reciprocal(jnp.sum(e1, axis=-1, keepdims=True), approx=True)
    g1 = 0.5 * jnp.tanh(0.5 * s1) + 0.5
    e2 = jnp.exp(g1)                      # g1 in (0.5, 0.7311): no overflow
    s2 = e2 * pl.reciprocal(jnp.sum(e2, axis=-1, keepdims=True), approx=True)
    o_ref[...] = (0.5 * jnp.tanh(0.5 * s2) + 0.5).astype(o_ref.dtype)


def mixed_precision_distance_functions_net(x, *, max_tile_rows=4096):
    """x: (..., W) array (e.g. NCHW). Returns same shape and dtype."""
    orig_shape = x.shape
    w = orig_shape[-1]
    rows = 1
    for d in orig_shape[:-1]:
        rows *= d
    x2d = x.reshape(rows, w)

    compiler_params = pltpu.CompilerParams(
        dimension_semantics=("parallel",),
        # Explicit VMEM budget; blocks are sized so in/out double buffers plus
        # intermediates stay well under v7x's 64 MiB physical VMEM.
        vmem_limit_bytes=48 * 1024 * 1024,
    )

    if 1 <= w <= _LANES and _LANES % w == 0:
        # Lane-dense fast path: pack 128 // w softmax rows per 128-lane row.
        pack = _LANES // w
        r = _round_up(rows, pack) // pack
        tile_r = _choose_tile_rows(r, max_tile_rows)
        r_pad = _round_up(r, tile_r)
        rows_pad = r_pad * pack
        if rows_pad != rows:
            x2d = jnp.pad(x2d, ((0, rows_pad - rows), (0, 0)))
        xp = x2d.reshape(r_pad, _LANES)

        out_p = pl.pallas_call(
            functools.partial(_packed_kernel, seg=w),
            out_shape=jax.ShapeDtypeStruct((r_pad, _LANES), x.dtype),
            grid_spec=pltpu.PrefetchScalarGridSpec(
                num_scalar_prefetch=0,
                grid=(r_pad // tile_r,),
                in_specs=[pl.BlockSpec((tile_r, _LANES), lambda i: (i, 0))],
                out_specs=pl.BlockSpec((tile_r, _LANES), lambda i: (i, 0)),
            ),
            compiler_params=compiler_params,
        )(xp)
        out2d = out_p.reshape(rows_pad, w)[:rows]
    else:
        # General path: whole rows per block; lane-dense automatically when W
        # is a multiple of 128, merely lane-padded (but correct) otherwise.
        bytes_per_row = w * 4
        cap = max(8, ((2 * 1024 * 1024) // bytes_per_row) // 8 * 8)
        tile_r = _choose_tile_rows(rows, cap)
        rows_pad = _round_up(rows, tile_r)
        x2p = x2d
        if rows_pad != rows:
            x2p = jnp.pad(x2d, ((0, rows_pad - rows), (0, 0)))
        out2d = pl.pallas_call(
            _rowwise_kernel,
            out_shape=jax.ShapeDtypeStruct((rows_pad, w), x.dtype),
            grid_spec=pltpu.PrefetchScalarGridSpec(
                num_scalar_prefetch=0,
                grid=(rows_pad // tile_r,),
                in_specs=[pl.BlockSpec((tile_r, w), lambda i: (i, 0))],
                out_specs=pl.BlockSpec((tile_r, w), lambda i: (i, 0)),
            ),
            compiler_params=compiler_params,
        )(x2p)[:rows]

    return out2d.reshape(orig_shape)


def _reference(x):
    """Pure-JAX reference mirroring the PyTorch forward."""
    x = jax.nn.softmax(x, axis=-1)
    x = jax.nn.sigmoid(x)
    x = jax.nn.softmax(x, axis=-1)
    x = jax.nn.sigmoid(x)
    return x


if __name__ == "__main__":
    key = jax.random.PRNGKey(0)
    # Small NCHW input consistent with the module's image-like input.
    x = jax.random.normal(key, (2, 4, 16, 16), dtype=jnp.float32)

    out = jax.block_until_ready(mixed_precision_distance_functions_net(x))
    ref = _reference(x)

    assert out.shape == x.shape and out.dtype == x.dtype
    max_err = float(jnp.max(jnp.abs(out - ref)))
    # approx-reciprocal + tanh-form sigmoid add ~1e-6..1e-5 abs error vs ref.
    assert max_err < 1e-4, f"mismatch vs reference: max abs err = {max_err}"

    print("KERNEL_OK")
</pallas_src>

<mosaic_0001>
module attributes {stable_mosaic.version = 11 : i64} {
  func.func @_packed_kernel(%arg0: i32, %arg1: memref<8x128xf32, #tpu.memory_space<vmem>>, %arg2: memref<8x128xf32, #tpu.memory_space<vmem>>) attributes {dimension_semantics = [#tpu.dimension_semantics<parallel>], iteration_bounds = array<i64: 2>, scalar_prefetch = 0 : i64, scratch_operands = 0 : i64, tpu.core_type = #tpu.core_type<tc>, window_params = [{transform_indices = @transform_0, window_bounds = array<i64: 8, 128>}, {transform_indices = @transform_1, window_bounds = array<i64: 8, 128>}]} {
    %0 = tpu.iota {dimensions = array<i32: 1>} : vector<8x128xi32>
    %c4_i32 = arith.constant 4 : i32
    %1 = vector.broadcast %c4_i32 : i32 to vector<8x128xi32>
    %2 = arith.shrsi %0, %1 : vector<8x128xi32>
    %3 = arith.sitofp %2 : vector<8x128xi32> to vector<8x128xf32>
    %c1_i32 = arith.constant 1 : i32
    %4 = tpu.dynamic_rotate %3 by %c1_i32 dim 1 : vector<8x128xf32>, i32 -> vector<8x128xf32>
    %5 = arith.cmpf oeq, %4, %3 : vector<8x128xf32>
    %c2_i32 = arith.constant 2 : i32
    %6 = tpu.dynamic_rotate %3 by %c2_i32 dim 1 : vector<8x128xf32>, i32 -> vector<8x128xf32>
    %7 = arith.cmpf oeq, %6, %3 : vector<8x128xf32>
    %c4_i32_0 = arith.constant 4 : i32
    %8 = tpu.dynamic_rotate %3 by %c4_i32_0 dim 1 : vector<8x128xf32>, i32 -> vector<8x128xf32>
    %9 = arith.cmpf oeq, %8, %3 : vector<8x128xf32>
    %c8_i32 = arith.constant 8 : i32
    %10 = tpu.dynamic_rotate %3 by %c8_i32 dim 1 : vector<8x128xf32>, i32 -> vector<8x128xf32>
    %11 = arith.cmpf oeq, %10, %3 : vector<8x128xf32>
    %c0 = arith.constant 0 : index
    %c0_1 = arith.constant 0 : index
    %12 = vector.load %arg1[%c0, %c0_1] : memref<8x128xf32, #tpu.memory_space<vmem>>, vector<8x128xf32>
    %c1_i32_2 = arith.constant 1 : i32
    %13 = tpu.dynamic_rotate %12 by %c1_i32_2 dim 1 : vector<8x128xf32>, i32 -> vector<8x128xf32>
    %c113_i32 = arith.constant 113 : i32
    %14 = tpu.dynamic_rotate %12 by %c113_i32 dim 1 : vector<8x128xf32>, i32 -> vector<8x128xf32>
    %15 = arith.select %5, %13, %14 : vector<8x128xi1>, vector<8x128xf32>
    %16 = arith.maximumf %12, %15 : vector<8x128xf32>
    %c2_i32_3 = arith.constant 2 : i32
    %17 = tpu.dynamic_rotate %16 by %c2_i32_3 dim 1 : vector<8x128xf32>, i32 -> vector<8x128xf32>
    %c114_i32 = arith.constant 114 : i32
    %18 = tpu.dynamic_rotate %16 by %c114_i32 dim 1 : vector<8x128xf32>, i32 -> vector<8x128xf32>
    %19 = arith.select %7, %17, %18 : vector<8x128xi1>, vector<8x128xf32>
    %20 = arith.maximumf %16, %19 : vector<8x128xf32>
    %c4_i32_4 = arith.constant 4 : i32
    %21 = tpu.dynamic_rotate %20 by %c4_i32_4 dim 1 : vector<8x128xf32>, i32 -> vector<8x128xf32>
    %c116_i32 = arith.constant 116 : i32
    %22 = tpu.dynamic_rotate %20 by %c116_i32 dim 1 : vector<8x128xf32>, i32 -> vector<8x128xf32>
    %23 = arith.select %9, %21, %22 : vector<8x128xi1>, vector<8x128xf32>
    %24 = arith.maximumf %20, %23 : vector<8x128xf32>
    %c8_i32_5 = arith.constant 8 : i32
    %25 = tpu.dynamic_rotate %24 by %c8_i32_5 dim 1 : vector<8x128xf32>, i32 -> vector<8x128xf32>
    %c120_i32 = arith.constant 120 : i32
    %26 = tpu.dynamic_rotate %24 by %c120_i32 dim 1 : vector<8x128xf32>, i32 -> vector<8x128xf32>
    %27 = arith.select %11, %25, %26 : vector<8x128xi1>, vector<8x128xf32>
    %28 = arith.maximumf %24, %27 : vector<8x128xf32>
    %29 = arith.subf %12, %28 : vector<8x128xf32>
    %30 = math.exp %29 : vector<8x128xf32>
    %c1_i32_6 = arith.constant 1 : i32
    %31 = tpu.dynamic_rotate %30 by %c1_i32_6 dim 1 : vector<8x128xf32>, i32 -> vector<8x128xf32>
    %c113_i32_7 = arith.constant 113 : i32
    %32 = tpu.dynamic_rotate %30 by %c113_i32_7 dim 1 : vector<8x128xf32>, i32 -> vector<8x128xf32>
    %33 = arith.select %5, %31, %32 : vector<8x128xi1>, vector<8x128xf32>
    %34 = arith.addf %30, %33 : vector<8x128xf32>
    %c2_i32_8 = arith.constant 2 : i32
    %35 = tpu.dynamic_rotate %34 by %c2_i32_8 dim 1 : vector<8x128xf32>, i32 -> vector<8x128xf32>
    %c114_i32_9 = arith.constant 114 : i32
    %36 = tpu.dynamic_rotate %34 by %c114_i32_9 dim 1 : vector<8x128xf32>, i32 -> vector<8x128xf32>
    %37 = arith.select %7, %35, %36 : vector<8x128xi1>, vector<8x128xf32>
    %38 = arith.addf %34, %37 : vector<8x128xf32>
    %c4_i32_10 = arith.constant 4 : i32
    %39 = tpu.dynamic_rotate %38 by %c4_i32_10 dim 1 : vector<8x128xf32>, i32 -> vector<8x128xf32>
    %c116_i32_11 = arith.constant 116 : i32
    %40 = tpu.dynamic_rotate %38 by %c116_i32_11 dim 1 : vector<8x128xf32>, i32 -> vector<8x128xf32>
    %41 = arith.select %9, %39, %40 : vector<8x128xi1>, vector<8x128xf32>
    %42 = arith.addf %38, %41 : vector<8x128xf32>
    %c8_i32_12 = arith.constant 8 : i32
    %43 = tpu.dynamic_rotate %42 by %c8_i32_12 dim 1 : vector<8x128xf32>, i32 -> vector<8x128xf32>
    %c120_i32_13 = arith.constant 120 : i32
    %44 = tpu.dynamic_rotate %42 by %c120_i32_13 dim 1 : vector<8x128xf32>, i32 -> vector<8x128xf32>
    %45 = arith.select %11, %43, %44 : vector<8x128xi1>, vector<8x128xf32>
    %46 = arith.addf %42, %45 : vector<8x128xf32>
    %47 = tpu.reciprocal %46 {approx = true} : vector<8x128xf32> -> vector<8x128xf32>
    %48 = arith.mulf %30, %47 : vector<8x128xf32>
    %cst = arith.constant 5.000000e-01 : f32
    %49 = vector.broadcast %cst : f32 to vector<8x128xf32>
    %50 = arith.mulf %49, %48 : vector<8x128xf32>
    %51 = math.tanh %50 : vector<8x128xf32>
    %cst_14 = arith.constant 5.000000e-01 : f32
    %52 = vector.broadcast %cst_14 : f32 to vector<8x128xf32>
    %53 = arith.mulf %52, %51 : vector<8x128xf32>
    %cst_15 = arith.constant 5.000000e-01 : f32
    %54 = vector.broadcast %cst_15 : f32 to vector<8x128xf32>
    %55 = arith.addf %53, %54 : vector<8x128xf32>
    %56 = math.exp %55 : vector<8x128xf32>
    %c1_i32_16 = arith.constant 1 : i32
    %57 = tpu.dynamic_rotate %56 by %c1_i32_16 dim 1 : vector<8x128xf32>, i32 -> vector<8x128xf32>
    %c113_i32_17 = arith.constant 113 : i32
    %58 = tpu.dynamic_rotate %56 by %c113_i32_17 dim 1 : vector<8x128xf32>, i32 -> vector<8x128xf32>
    %59 = arith.select %5, %57, %58 : vector<8x128xi1>, vector<8x128xf32>
    %60 = arith.addf %56, %59 : vector<8x128xf32>
    %c2_i32_18 = arith.constant 2 : i32
    %61 = tpu.dynamic_rotate %60 by %c2_i32_18 dim 1 : vector<8x128xf32>, i32 -> vector<8x128xf32>
    %c114_i32_19 = arith.constant 114 : i32
    %62 = tpu.dynamic_rotate %60 by %c114_i32_19 dim 1 : vector<8x128xf32>, i32 -> vector<8x128xf32>
    %63 = arith.select %7, %61, %62 : vector<8x128xi1>, vector<8x128xf32>
    %64 = arith.addf %60, %63 : vector<8x128xf32>
    %c4_i32_20 = arith.constant 4 : i32
    %65 = tpu.dynamic_rotate %64 by %c4_i32_20 dim 1 : vector<8x128xf32>, i32 -> vector<8x128xf32>
    %c116_i32_21 = arith.constant 116 : i32
    %66 = tpu.dynamic_rotate %64 by %c116_i32_21 dim 1 : vector<8x128xf32>, i32 -> vector<8x128xf32>
    %67 = arith.select %9, %65, %66 : vector<8x128xi1>, vector<8x128xf32>
    %68 = arith.addf %64, %67 : vector<8x128xf32>
    %c8_i32_22 = arith.constant 8 : i32
    %69 = tpu.dynamic_rotate %68 by %c8_i32_22 dim 1 : vector<8x128xf32>, i32 -> vector<8x128xf32>
    %c120_i32_23 = arith.constant 120 : i32
    %70 = tpu.dynamic_rotate %68 by %c120_i32_23 dim 1 : vector<8x128xf32>, i32 -> vector<8x128xf32>
    %71 = arith.select %11, %69, %70 : vector<8x128xi1>, vector<8x128xf32>
    %72 = arith.addf %68, %71 : vector<8x128xf32>
    %73 = tpu.reciprocal %72 {approx = true} : vector<8x128xf32> -> vector<8x128xf32>
    %74 = arith.mulf %56, %73 : vector<8x128xf32>
    %cst_24 = arith.constant 5.000000e-01 : f32
    %75 = vector.broadcast %cst_24 : f32 to vector<8x128xf32>
    %76 = arith.mulf %75, %74 : vector<8x128xf32>
    %77 = math.tanh %76 : vector<8x128xf32>
    %cst_25 = arith.constant 5.000000e-01 : f32
    %78 = vector.broadcast %cst_25 : f32 to vector<8x128xf32>
    %79 = arith.mulf %78, %77 : vector<8x128xf32>
    %cst_26 = arith.constant 5.000000e-01 : f32
    %80 = vector.broadcast %cst_26 : f32 to vector<8x128xf32>
    %81 = arith.addf %79, %80 : vector<8x128xf32>
    %c0_27 = arith.constant 0 : index
    %c0_28 = arith.constant 0 : index
    %82 = vector.load %arg2[%c0_27, %c0_28] : memref<8x128xf32, #tpu.memory_space<vmem>>, vector<8x128xf32>
    tpu.vector_store %arg2[%c0_27, %c0_28], %81 {strides = array<i32>} : memref<8x128xf32, #tpu.memory_space<vmem>>, vector<8x128xf32>,
    return
  }
  func.func @transform_0(%arg0: i32) -> (i32, i32) {
    %c0_i32 = arith.constant 0 : i32
    %c0_i32_0 = arith.constant 0 : i32
    return %arg0, %c0_i32 : i32, i32
  }
  func.func @transform_1(%arg0: i32) -> (i32, i32) {
    %c0_i32 = arith.constant 0 : i32
    %c0_i32_0 = arith.constant 0 : i32
    return %arg0, %c0_i32 : i32, i32
  }
}

</mosaic_0001>

<llo_original>
// kernel: tpu_custom_call.1
$region0: #{tpu_custom_call.1}
  #allocation0 [shape = 'u32[]', space=smem, size = 0x4, offset = 0x4, fixed_abs, tag = 'smem constant byte address 0x4 - core index']
  #allocation1 [shape = 'u32[144,128]{1,0:T(1,128)}', space=vmem, size = 0x12000, scoped, tag = 'internal scratch']
  %s0 = inlined_call_operand.hbm [shape: f32[16,128], index: 0, kind: input, shape index: {}]
  %s1 = inlined_call_operand.hbm [shape: f32[16,128], index: 1, kind: output, shape index: {}]
  %s2 = sld [smem:[#allocation0]]
  $region41: #{tpu_custom_call.1} parent=0
    _
  %s4 = ssub.s32 1, %s2
  %s5 = scalar_select 0, %s4, %s2
  $region1: #{tpu_custom_call.1} parent=0
    #allocation2 [shape = 'u8[8192]{0}', space=vmem, size = 0x2000, scoped, tag = 'input window, operand 0']
    #allocation3 [shape = 's32[2]{0}', space=sflag, size = 0x8, scoped, tag = 'scoped memory for tpu_custom_call.1']
    #allocation4 [shape = 's32[2]{0}', space=sflag, size = 0x8, scoped, tag = 'scoped memory for tpu_custom_call.1']
    #allocation5 [shape = 'u8[8192]{0}', space=vmem, size = 0x2000, scoped, tag = 'output window, operand 0']
    %6 = vsyncpa [#allocation3], 0
    %s7 = scalar_lea.sflag [#allocation3], 1
    %8 = vsyncpa %s7, 0
    %9 = vsyncpa [#allocation4], 0
    %s10 = scalar_lea.sflag [#allocation4], 1
    %11 = vsyncpa %s10, 0
    loop: start=0, step=1, limit=4
    $region2: #{tpu_custom_call.1} parent=1 // loop_pre_header
      _
    $region3: #{tpu_custom_call.1} parent=1 // loop_header
      %s13 = sphi 0, %s17
      %p14 = scmp.ge.s32.totalorder %s13, 4
      %s23 = sphi 0, %s25
      %s26 = sphi 0, %s23
      %s27 = sphi 0, %s26
      %s43 = sphi 0, %s27
      %s49 = sphi 0, %s51
      %s52 = sphi 0, %s49
      %s53 = sphi 0, %s52
      %s69 = sphi 0, %s53
    $region4: #{tpu_custom_call.1} parent=1 // loop_header_branch
      %16 = sbr.rel (%p14) target = $region8
    $region5: #{tpu_custom_call.1} parent=1 // loop_body
      %s18 = ssub.s32 %s13, 1
      %s19 = ssub.s32 %s13, 2
      %s20 = sadd.s32 %s13, 1
      %s21 = ssub.s32 %s13, %s20
      %p22 = scmp.eq.s32.totalorder %s21, 0
      %s24 = sadd.s32 %s23, 1
      %s25 = scalar_select %p22, %s23, %s24
      %p28 = pneg %p22
      %p29 = scmp.eq.s32.totalorder %s13, 1
      %p30 = por %p28, %p29
      %p31 = scmp.ne.s32.totalorder %s23, %s26
      %p32 = scmp.eq.s32.totalorder %s13, 0
      %p33 = por %p31, %p32
      %p34 = scmp.ne.s32.totalorder %s23, %s26
      %p35 = scmp.eq.s32.totalorder %s18, 1
      %p36 = por %p34, %p35
      %p37 = scmp.ne.s32.totalorder %s26, %s27
      %p38 = scmp.eq.s32.totalorder %s18, 0
      %p39 = por %p37, %p38
      %p40 = scmp.ne.s32.totalorder %s26, %s27
      %p41 = scmp.eq.s32.totalorder %s19, 1
      %p42 = por %p40, %p41
      %p44 = scmp.ne.s32.totalorder %s27, %s43
      %p45 = scmp.eq.s32.totalorder %s19, 0
      %p46 = por %p44, %p45
      %s47 = ssub.s32 %s13, %s20
      %p48 = scmp.eq.s32.totalorder %s47, 0
      %s50 = sadd.s32 %s49, 1
      %s51 = scalar_select %p48, %s49, %s50
      %p54 = pneg %p48
      %p55 = scmp.eq.s32.totalorder %s13, 1
      %p56 = por %p54, %p55
      %p57 = scmp.ne.s32.totalorder %s49, %s52
      %p58 = scmp.eq.s32.totalorder %s13, 0
      %p59 = por %p57, %p58
      %p60 = scmp.ne.s32.totalorder %s49, %s52
      %p61 = scmp.eq.s32.totalorder %s18, 1
      %p62 = por %p60, %p61
      %p63 = scmp.ne.s32.totalorder %s52, %s53
      %p64 = scmp.eq.s32.totalorder %s18, 0
      %p65 = por %p63, %p64
      %p66 = scmp.ne.s32.totalorder %s52, %s53
      %p67 = scmp.eq.s32.totalorder %s19, 1
      %p68 = por %p66, %p67
      %p70 = scmp.ne.s32.totalorder %s53, %s69
      %p71 = scmp.eq.s32.totalorder %s19, 0
      %p72 = por %p70, %p71
      %p73 = scmp.le.s32.totalorder 1, %s13
      %p74 = scmp.lt.s32.totalorder %s13, 3
      %p75 = pnand %p73, %p74
      %p76 = pneg %p75
      // Predicated region
      $region9: #{tpu_custom_call.1} parent=5 // pred_check
        _
      $region10: #{tpu_custom_call.1} parent=5 // pred_check_branch
        %78 = sbr.rel (%p75) target = $region12
      $region11: #{tpu_custom_call.1} parent=5 // pred_region
        %s79 = ssub.s32 %s13, 1
      $region12: #{tpu_custom_call.1} parent=5 // pred_fallthru
        _
      %p80 = scmp.lt.s32.totalorder %s13, 2
      // Predicated region
      $region13: #{tpu_custom_call.1} parent=5 // pred_check
        %p81 = pneg %p80
      $region14: #{tpu_custom_call.1} parent=5 // pred_check_branch
        %83 = sbr.rel (%p81) target = $region16
      $region15: #{tpu_custom_call.1} parent=5 // pred_region
        // Predicated region
        $region17: #{tpu_custom_call.1} parent=15 // pred_check
          %p84 = pneg %p33
        $region18: #{tpu_custom_call.1} parent=15 // pred_check_branch
          %86 = sbr.rel (%p84) target = $region20
        $region19: #{tpu_custom_call.1} parent=15 // pred_region
          %s87 = sand.u32 %s23, 1
          %s88 = scalar_lea.sflag [#allocation3], %s87
          %s89 = sand.u32 %s23, 1
          %s90 = smul.addr %s89, 8
          %s91 = scalar_lea.vmem [#allocation2], %s90
          %s93 = ssub.s32 128, 128
          %94 = vsyncadd %s88, %s93
          %s95 = smul.addr %s13, 128
          %s96 = scalar_lea.hbm %s0, %s95
          %s98 = sshll.u32 %s91, 4
          %s99 = int_to_ptr.vmem [resolvable:$true] %s98
          %101 = dma.hbm_to_vmem [thread:$0]  %s96, 128, %s99, %s88
        $region20: #{tpu_custom_call.1} parent=15 // pred_fallthru
          _
      $region16: #{tpu_custom_call.1} parent=5 // pred_fallthru
        _
      %p102 = scmp.le.s32.totalorder 1, %s13
      %p103 = scmp.lt.s32.totalorder %s13, 3
      %p104 = pnand %p102, %p103
      %p105 = pneg %p104
      // Predicated region
      $region21: #{tpu_custom_call.1} parent=5 // pred_check
        _
      $region22: #{tpu_custom_call.1} parent=5 // pred_check_branch
        %107 = sbr.rel (%p104) target = $region24
      $region23: #{tpu_custom_call.1} parent=5 // pred_region
        %s108 = ssub.s32 %s13, 1
        %s109 = sand.u32 %s26, 1
        %s110 = scalar_lea.sflag [#allocation3], %s109
        %s111 = sand.u32 %s26, 1
        %s112 = smul.addr %s111, 8
        %s113 = scalar_lea.vmem [#allocation2], %s112
        // Predicated region
        $region25: #{tpu_custom_call.1} parent=23 // pred_check
          %p114 = pneg %p39
        $region26: #{tpu_custom_call.1} parent=23 // pred_check_branch
          %116 = sbr.rel (%p114) target = $region28
        $region27: #{tpu_custom_call.1} parent=23 // pred_region
          %117 = dma.done %s110, 128
        $region28: #{tpu_custom_call.1} parent=23 // pred_fallthru
          _
        %s118 = sand.u32 %s26, 1
        %s119 = scalar_lea.sflag [#allocation3], %s118
        %s120 = sand.u32 %s26, 1
        %s121 = smul.addr %s120, 8
        %s122 = scalar_lea.vmem [#allocation2], %s121
        %p123 = pneg %p39
        %p124 = pneg %p36
        %p125 = pneg %p65
        %p126 = pneg %p62
        %s127 = sand.u32 %s52, 1
        %s128 = scalar_lea.sflag [#allocation4], %s127
        %s129 = sand.u32 %s52, 1
        %s130 = smul.addr %s129, 8
        %s131 = scalar_lea.vmem [#allocation5], %s130
        %v132 = vlaneseq
        %v133 = vand.u32 %v132, 127
        %v134 = vshra.s32 %v133, 4
        %v135 = vcvt.s32.f32 %v134
        %136 = vrot.lane.b32.xlu0 %v135, 1
        %v137 = vpop.permute.xlu0 %136
        %vm138 = vcmp.eq.f32.partialorder %v137, %v135
        %139 = vrot.lane.b32.xlu0 %v135, 2
        %v140 = vpop.permute.xlu0 %139
        %vm141 = vcmp.eq.f32.partialorder %v140, %v135
        %142 = vrot.lane.b32.xlu0 %v135, 4
        %v143 = vpop.permute.xlu0 %142
        %vm144 = vcmp.eq.f32.partialorder %v143, %v135
        %145 = vrot.lane.b32.xlu0 %v135, 8
        %v146 = vpop.permute.xlu0 %145
        %vm147 = vcmp.eq.f32.partialorder %v146, %v135
        %v148 = vld [vmem:[%s113] sm:$0xff]
        %149 = vrot.lane.b32.xlu0 %v148, 1
        %v150 = vpop.permute.xlu0 %149
        %151 = vrot.lane.b32.xlu0 %v148, 113
        %v152 = vpop.permute.xlu0 %151
        %v153 = vsel %vm138, %v150, %v152
        %v154 = vmax.f32 %v148, %v153
        %155 = vrot.lane.b32.xlu0 %v154, 2
        %v156 = vpop.permute.xlu0 %155
        %157 = vrot.lane.b32.xlu0 %v154, 114
        %v158 = vpop.permute.xlu0 %157
        %v159 = vsel %vm141, %v156, %v158
        %v160 = vmax.f32 %v154, %v159
        %161 = vrot.lane.b32.xlu0 %v160, 4
        %v162 = vpop.permute.xlu0 %161
        %163 = vrot.lane.b32.xlu0 %v160, 116
        %v164 = vpop.permute.xlu0 %163
        %v165 = vsel %vm144, %v162, %v164
        %v166 = vmax.f32 %v160, %v165
        %167 = vrot.lane.b32.xlu0 %v166, 8
        %v168 = vpop.permute.xlu0 %167
        %169 = vrot.lane.b32.xlu0 %v166, 120
        %v170 = vpop.permute.xlu0 %169
        %v171 = vsel %vm147, %v168, %v170
        %v172 = vmax.f32 %v166, %v171
        %v173 = vsub.f32 %v148, %v172
        %v174 = vmul.f32 %v173, 1.442695
        %v175 = vpow.pop %v174
        %176 = vrot.lane.b32.xlu0 %v175, 1
        %v177 = vpop.permute.xlu0 %176
        %178 = vrot.lane.b32.xlu0 %v175, 113
        %v179 = vpop.permute.xlu0 %178
        %v180 = vsel %vm138, %v177, %v179
        %v181 = vadd.f32 %v175, %v180
        %182 = vrot.lane.b32.xlu0 %v181, 2
        %v183 = vpop.permute.xlu0 %182
        %184 = vrot.lane.b32.xlu0 %v181, 114
        %v185 = vpop.permute.xlu0 %184
        %v186 = vsel %vm141, %v183, %v185
        %v187 = vadd.f32 %v181, %v186
        %188 = vrot.lane.b32.xlu0 %v187, 4
        %v189 = vpop.permute.xlu0 %188
        %190 = vrot.lane.b32.xlu0 %v187, 116
        %v191 = vpop.permute.xlu0 %190
        %v192 = vsel %vm144, %v189, %v191
        %v193 = vadd.f32 %v187, %v192
        %194 = vrot.lane.b32.xlu0 %v193, 8
        %v195 = vpop.permute.xlu0 %194
        %196 = vrot.lane.b32.xlu0 %v193, 120
        %v197 = vpop.permute.xlu0 %196
        %v198 = vsel %vm147, %v195, %v197
        %v199 = vadd.f32 %v193, %v198
        %v200 = vrcp.pop %v199
        %v201 = vmul.f32 %v175, %v200
        %v202 = vmul.f32 %v201, 0.5
        %v203 = vtanh.pop %v202
        %v204 = vmul.f32 %v203, 0.5
        %v205 = vadd.f32 %v204, 0.5
        %v206 = vmul.f32 %v205, 1.442695
        %v207 = vpow.pop %v206
        %208 = vrot.lane.b32.xlu0 %v207, 1
        %v209 = vpop.permute.xlu0 %208
        %210 = vrot.lane.b32.xlu0 %v207, 113
        %v211 = vpop.permute.xlu0 %210
        %v212 = vsel %vm138, %v209, %v211
        %v213 = vadd.f32 %v207, %v212
        %214 = vrot.lane.b32.xlu0 %v213, 2
        %v215 = vpop.permute.xlu0 %214
        %216 = vrot.lane.b32.xlu0 %v213, 114
        %v217 = vpop.permute.xlu0 %216
        %v218 = vsel %vm141, %v215, %v217
        %v219 = vadd.f32 %v213, %v218
        %220 = vrot.lane.b32.xlu0 %v219, 4
        %v221 = vpop.permute.xlu0 %220
        %222 = vrot.lane.b32.xlu0 %v219, 116
        %v223 = vpop.permute.xlu0 %222
        %v224 = vsel %vm144, %v221, %v223
        %v225 = vadd.f32 %v219, %v224
        %226 = vrot.lane.b32.xlu0 %v225, 8
        %v227 = vpop.permute.xlu0 %226
        %228 = vrot.lane.b32.xlu0 %v225, 120
        %v229 = vpop.permute.xlu0 %228
        %v230 = vsel %vm147, %v227, %v229
        %v231 = vadd.f32 %v225, %v230
        %v232 = vrcp.pop %v231
        %v233 = vmul.f32 %v207, %v232
        %v234 = vmul.f32 %v233, 0.5
        %v235 = vtanh.pop %v234
        %v236 = vmul.f32 %v235, 0.5
        %v237 = vadd.f32 %v236, 0.5
        %238 = vst [vmem:[%s131] sm:$0xff] %v237
        %s239 = sand.u32 %s52, 1
        %s240 = scalar_lea.sflag [#allocation4], %s239
        %s241 = sand.u32 %s52, 1
        %s242 = smul.addr %s241, 8
        %s243 = scalar_lea.vmem [#allocation5], %s242
        // Predicated region
        $region29: #{tpu_custom_call.1} parent=23 // pred_check
          %p244 = pneg %p62
        $region30: #{tpu_custom_call.1} parent=23 // pred_check_branch
          %246 = sbr.rel (%p244) target = $region32
        $region31: #{tpu_custom_call.1} parent=23 // pred_region
          %s248 = ssub.s32 128, 128
          %249 = vsyncadd %s240, %s248
          %s250 = smul.addr %s18, 128
          %s251 = scalar_lea.hbm %s1, %s250
          %s253 = sshll.u32 %s243, 4
          %s254 = int_to_ptr.vmem [resolvable:$true] %s253
          %256 = dma.vmem_to_hbm [thread:$0]  %s254, 128, %s251, %s240
        $region32: #{tpu_custom_call.1} parent=23 // pred_fallthru
          _
      $region24: #{tpu_custom_call.1} parent=5 // pred_fallthru
        _
      %p257 = scmp.le.s32.totalorder 2, %s13
      // Predicated region
      $region33: #{tpu_custom_call.1} parent=5 // pred_check
        %p258 = pneg %p257
      $region34: #{tpu_custom_call.1} parent=5 // pred_check_branch
        %260 = sbr.rel (%p258) target = $region36
      $region35: #{tpu_custom_call.1} parent=5 // pred_region
        %s261 = ssub.s32 %s13, 2
        // Predicated region
        $region37: #{tpu_custom_call.1} parent=35 // pred_check
          %p262 = pneg %p68
        $region38: #{tpu_custom_call.1} parent=35 // pred_check_branch
          %264 = sbr.rel (%p262) target = $region40
        $region39: #{tpu_custom_call.1} parent=35 // pred_region
          %s265 = sand.u32 %s53, 1
          %s266 = scalar_lea.sflag [#allocation4], %s265
          %s267 = sand.u32 %s53, 1
          %s268 = smul.addr %s267, 8
          %s269 = scalar_lea.vmem [#allocation5], %s268
          %270 = dma.done %s266, 128
        $region40: #{tpu_custom_call.1} parent=35 // pred_fallthru
          _
      $region36: #{tpu_custom_call.1} parent=5 // pred_fallthru
        _
    $region6: #{tpu_custom_call.1} parent=1 // loop_footer
      %s17 = sadd.s32 1, %s13
    $region7: #{tpu_custom_call.1} parent=1 // loop_footer_branch
      %12 = sbr.rel target = $region3
    $region8: #{tpu_custom_call.1} parent=1 // loop_exit
      _
    %271 = vsyncpa [#allocation3], 1
    %s272 = scalar_lea.sflag [#allocation3], 1
    %273 = vsyncpa %s272, 1
    %274 = vsyncpa [#allocation4], 1
    %s275 = scalar_lea.sflag [#allocation4], 1
    %276 = vsyncpa %s275, 1

</llo_original>
